<compile_context>
chip_gen: v5e
topology: v5e:2x2
jax: 0.10.0
libtpu: 0.0.40
codegen_flags: <defaults>
</compile_context>

<pallas_src>
import functools
import math

import numpy as np

import jax
import jax.numpy as jnp
from jax import lax
from jax.experimental import pallas as pl
from jax.experimental.pallas import tpu as pltpu


_NEG = -1e30  # stands in for -inf on masked (padded) log-weights


def _sinkhorn_kernel(eps_ref, inv_eps_ref, xs_ref, xt_ref, out_ref, *,
                     n_iters, n_real):
    f32 = jnp.float32
    xs = xs_ref[...]                      # (n_pad, d_pad) f32
    xt = xt_ref[...]
    n_pad = xs.shape[0]

    # --- cosine cost matrices: C(a, b) = (1 - <a/|a|, b/|b|>)^2 --------------
    xs_n = xs * lax.rsqrt(jnp.sum(xs * xs, axis=-1, keepdims=True))
    xt_n = xt * lax.rsqrt(jnp.sum(xt * xt, axis=-1, keepdims=True))

    dn = (((1,), (1,)), ((), ()))         # contract last dim of both operands

    def cos_cost(a, b):
        g = lax.dot_general(a, b, dimension_numbers=dn,
                            preferred_element_type=f32)
        d = 1.0 - g
        return d * d

    c_xy = cos_cost(xs_n, xt_n)           # rows: x (sublanes), cols: y (lanes)
    c_xx = cos_cost(xs_n, xs_n)           # symmetric
    c_yy = cos_cost(xt_n, xt_n)           # symmetric

    # --- uniform weights / log-weights, padding masked out -------------------
    inv_n = f32(1.0 / n_real)
    log_a = f32(-math.log(n_real))
    idx_col = lax.broadcasted_iota(jnp.int32, (n_pad, 1), 0)
    idx_row = lax.broadcasted_iota(jnp.int32, (1, n_pad), 1)
    w_col = jnp.where(idx_col < n_real, inv_n, f32(0.0))
    w_row = jnp.where(idx_row < n_real, inv_n, f32(0.0))
    la_col = jnp.where(idx_col < n_real, log_a, f32(_NEG))
    la_row = jnp.where(idx_row < n_real, log_a, f32(_NEG))
    # (source/target weights coincide: both halves contain n_real points)

    # --- exact (1,N) -> (N,1) flip via a 0/1 identity mask --------------------
    # Pure VPU multiply + lane reduction: exact in f32, no reliance on Mosaic
    # small-vector transposes, no MXU precision path.  Only the *finite*
    # potentials pass through it; the -1e30 mask is re-applied via la_col.
    ii = lax.broadcasted_iota(jnp.int32, (n_pad, n_pad), 0)
    jj = lax.broadcasted_iota(jnp.int32, (n_pad, n_pad), 1)
    eye = jnp.where(ii == jj, f32(1.0), f32(0.0))

    def to_col(v_row):                    # (1, n_pad) -> (n_pad, 1)
        return jnp.sum(eye * v_row, axis=-1, keepdims=True)

    # --- soft-min helpers (pre-scaled cost, both reduction orientations) -----
    def softmin_lanes(cs, h_row, eps):
        # out_i = -eps * logsumexp_j(h_row[j] - cs[i, j])   -> (n_pad, 1)
        v = h_row - cs
        m = jnp.max(v, axis=-1, keepdims=True)
        return -eps * (m + jnp.log(jnp.sum(jnp.exp(v - m), axis=-1,
                                           keepdims=True)))

    def softmin_sublanes(cs, h_col, eps):
        # out_j = -eps * logsumexp_i(h_col[i] - cs[i, j])   -> (1, n_pad)
        v = h_col - cs
        m = jnp.max(v, axis=0, keepdims=True)
        return -eps * (m + jnp.log(jnp.sum(jnp.exp(v - m), axis=0,
                                           keepdims=True)))

    # --- initialisation with the largest eps ---------------------------------
    eps0 = eps_ref[0]
    inv0 = inv_eps_ref[0]
    s_xy = c_xy * inv0
    s_xx = c_xx * inv0
    s_yy = c_yy * inv0
    f_ba_c = softmin_lanes(s_xy, la_row, eps0)       # (N,1) potential on x
    g_ab_r = softmin_sublanes(s_xy, la_col, eps0)    # (1,N) potential on y
    f_aa_r = softmin_sublanes(s_xx, la_col, eps0)    # (1,N) de-bias on x
    g_bb_r = softmin_sublanes(s_yy, la_col, eps0)    # (1,N) de-bias on y

    # --- symmetric Sinkhorn iterations over the annealing schedule -----------
    def body(i, carry):
        f_ba_c, g_ab_r, f_aa_r, g_bb_r = carry
        eps = eps_ref[i]
        inv_eps = inv_eps_ref[i]
        # Hoisted scaling: one N^2 multiply per cost matrix per iteration.
        s_xy = c_xy * inv_eps
        s_xx = c_xx * inv_eps
        s_yy = c_yy * inv_eps
        ft_ba_c = softmin_lanes(s_xy, la_row + g_ab_r * inv_eps, eps)
        gt_ab_r = softmin_sublanes(s_xy, la_col + f_ba_c * inv_eps, eps)
        # c_xx / c_yy are symmetric: a single softmin each; the column
        # orientation of the carried potential is recovered with to_col.
        ft_aa_r = softmin_sublanes(s_xx, la_col + to_col(f_aa_r) * inv_eps, eps)
        gt_bb_r = softmin_sublanes(s_yy, la_col + to_col(g_bb_r) * inv_eps, eps)
        return (0.5 * (f_ba_c + ft_ba_c), 0.5 * (g_ab_r + gt_ab_r),
                0.5 * (f_aa_r + ft_aa_r), 0.5 * (g_bb_r + gt_bb_r))

    carry = (f_ba_c, g_ab_r, f_aa_r, g_bb_r)
    carry = lax.fori_loop(0, n_iters, body, carry)   # not unrolled
    f_ba_c, g_ab_r, f_aa_r, g_bb_r = carry

    # --- last extrapolation at the final (sharpest) eps ----------------------
    eps = eps_ref[n_iters - 1]
    inv_eps = inv_eps_ref[n_iters - 1]
    s_xy = c_xy * inv_eps
    s_xx = c_xx * inv_eps
    s_yy = c_yy * inv_eps
    f_ba_fin = softmin_lanes(s_xy, la_row + g_ab_r * inv_eps, eps)           # (N,1)
    g_ab_fin = softmin_sublanes(s_xy, la_col + f_ba_c * inv_eps, eps)        # (1,N)
    f_aa_fin = softmin_sublanes(s_xx, la_col + to_col(f_aa_r) * inv_eps, eps)  # (1,N)
    g_bb_fin = softmin_sublanes(s_yy, la_col + to_col(g_bb_r) * inv_eps, eps)  # (1,N)

    # --- de-biased Sinkhorn cost: <a, f_ba - f_aa> + <b, g_ab - g_bb> --------
    loss = (jnp.sum(w_col * f_ba_fin) - jnp.sum(w_row * f_aa_fin)
            + jnp.sum(w_row * (g_ab_fin - g_bb_fin)))
    out_ref[0, 0] = loss


def _round_up(x, m):
    return ((x + m - 1) // m) * m


def _epsilon_schedule(xs, xt, p, blur, scaling):
    """geomloss scaling_parameters/epsilon_schedule (diameter from raw coords)."""
    mins = np.minimum(np.min(xs, axis=0), np.min(xt, axis=0))
    maxs = np.maximum(np.max(xs, axis=0), np.max(xt, axis=0))
    diameter = float(np.sqrt(np.sum((maxs - mins) ** 2)))
    eps_list = ([diameter ** p]
                + [float(np.exp(e)) for e in
                   np.arange(p * np.log(diameter), p * np.log(blur),
                             p * np.log(scaling))]
                + [blur ** p])
    return eps_list


def wasserstein_loss(feats, label=None, *, p=2, blur=0.05, scaling=0.5):
    """Forward of Wasserstein_Loss(source_cls=0, metric='cosine',
    source_fix=False, stable=False).  `label` is unused in this (default)
    'last_half' configuration.

    NOTE: like geomloss, the epsilon-annealing schedule is built host-side
    from the data diameter, so this wrapper is eager (not jit-traceable);
    only a change of the schedule *length* triggers a Pallas recompile
    (cheap now that the in-kernel loop is not unrolled).
    """
    feats = jnp.asarray(feats, jnp.float32)
    bsz, dim = feats.shape
    n = bsz // 2
    assert n >= 1, "need at least 2 rows to split into source/target halves"
    xs = feats[:n]
    xt = feats[bsz - n:]

    eps_list = _epsilon_schedule(np.asarray(xs), np.asarray(xt), p, blur, scaling)
    n_iters = len(eps_list)
    eps_arr = jnp.asarray(eps_list, jnp.float32)
    inv_eps_arr = jnp.asarray([1.0 / e for e in eps_list], jnp.float32)

    # Lane/sublane friendly padding (value preserving: padded points get zero
    # weight / -1e30 log-weight in the kernel; padded feature columns are 0).
    n_pad = _round_up(n, 8)
    d_pad = _round_up(dim, 128)

    def pad(v):
        buf = jnp.ones((n_pad, d_pad), jnp.float32)  # ones keep pad-row norms finite
        buf = buf.at[:n, :dim].set(v)
        if d_pad > dim:
            buf = buf.at[:n, dim:].set(0.0)
        return buf

    xs_p = pad(xs)
    xt_p = pad(xt)

    # Advisory cost estimate (3 Gram matmuls + ~4 softmins + 2 flips / iter).
    flops = int(3 * 2 * n_pad * n_pad * d_pad
                + (n_iters + 2) * 30 * n_pad * n_pad)
    transcendentals = int((n_iters + 2) * (4 * n_pad * n_pad + 4 * n_pad))
    bytes_accessed = int(4 * (2 * n_pad * d_pad + 2 * n_iters + 1))

    # Explicit scoped-VMEM budget: resident cost matrices + eye + features +
    # a few N^2 softmin temporaries (kept within every generation's physical VMEM).
    vmem_bytes = 4 * (12 * n_pad * n_pad + 6 * n_pad * d_pad) + (1 << 20)
    vmem_bytes = int(min(max(vmem_bytes, 32 << 20), 64 << 20))

    out = pl.pallas_call(
        functools.partial(_sinkhorn_kernel, n_iters=n_iters, n_real=n),
        out_shape=jax.ShapeDtypeStruct((1, 1), jnp.float32),
        in_specs=[
            pl.BlockSpec(memory_space=pltpu.MemorySpace.SMEM),   # eps schedule
            pl.BlockSpec(memory_space=pltpu.MemorySpace.SMEM),   # 1/eps schedule
            pl.BlockSpec(memory_space=pltpu.MemorySpace.VMEM),   # source half
            pl.BlockSpec(memory_space=pltpu.MemorySpace.VMEM),   # target half
        ],
        out_specs=pl.BlockSpec(memory_space=pltpu.MemorySpace.SMEM),
        compiler_params=pltpu.CompilerParams(vmem_limit_bytes=vmem_bytes),
        cost_estimate=pl.CostEstimate(flops=flops,
                                      transcendentals=transcendentals,
                                      bytes_accessed=bytes_accessed),
    )(eps_arr, inv_eps_arr, xs_p, xt_p)
    return out[0, 0]


def _reference_loss(feats, *, p=2, blur=0.05, scaling=0.5):
    """Pure-JAX re-implementation of geomloss SamplesLoss('sinkhorn', p=2,
    blur=0.05, scaling=0.5, debias=True) with the cosine cost on the
    'last_half' split — mirrors the PyTorch forward (value-wise)."""
    feats = jnp.asarray(feats, jnp.float32)
    bsz = feats.shape[0]
    n = bsz // 2
    x = feats[:n]
    y = feats[bsz - n:]

    hi = jax.lax.Precision.HIGHEST
    xn = x / jnp.sqrt(jnp.sum(x * x, axis=1, keepdims=True))
    yn = y / jnp.sqrt(jnp.sum(y * y, axis=1, keepdims=True))
    c_xy = (1.0 - jnp.matmul(xn, yn.T, precision=hi)) ** 2
    c_yx = c_xy.T
    c_xx = (1.0 - jnp.matmul(xn, xn.T, precision=hi)) ** 2
    c_yy = (1.0 - jnp.matmul(yn, yn.T, precision=hi)) ** 2

    a = jnp.full((n,), 1.0 / n, jnp.float32)
    la = jnp.log(a)

    eps_list = _epsilon_schedule(np.asarray(x), np.asarray(y), p, blur, scaling)

    def softmin(eps, c, h):
        return -eps * jax.scipy.special.logsumexp(h[None, :] - c / eps, axis=1)

    eps = eps_list[0]
    f_aa = softmin(eps, c_xx, la)
    g_bb = softmin(eps, c_yy, la)
    g_ab = softmin(eps, c_yx, la)
    f_ba = softmin(eps, c_xy, la)
    for eps in eps_list:
        ft_ba = softmin(eps, c_xy, la + g_ab / eps)
        gt_ab = softmin(eps, c_yx, la + f_ba / eps)
        ft_aa = softmin(eps, c_xx, la + f_aa / eps)
        gt_bb = softmin(eps, c_yy, la + g_bb / eps)
        f_ba, g_ab = 0.5 * (f_ba + ft_ba), 0.5 * (g_ab + gt_ab)
        f_aa, g_bb = 0.5 * (f_aa + ft_aa), 0.5 * (g_bb + gt_bb)
    eps = eps_list[-1]
    f_ba, g_ab = (softmin(eps, c_xy, la + g_ab / eps),
                  softmin(eps, c_yx, la + f_ba / eps))
    f_aa = softmin(eps, c_xx, la + f_aa / eps)
    g_bb = softmin(eps, c_yy, la + g_bb / eps)
    return jnp.sum(a * (f_ba - f_aa)) + jnp.sum(a * (g_ab - g_bb))


if __name__ == "__main__":
    batch = 8
    feat_dim = 32

    key = jax.random.PRNGKey(0)
    feats = jax.random.normal(key, (batch, feat_dim), dtype=jnp.float32)
    labels = jnp.zeros((batch,), jnp.int32)   # unused in the default 'last_half' config

    loss = wasserstein_loss(feats, labels)
    loss = jax.block_until_ready(loss)

    ref = jax.block_until_ready(_reference_loss(feats))
    assert jnp.isfinite(loss), loss
    # Tolerance covers TPU matmul-precision-mode differences between the
    # Pallas MXU Grams and the pure-JAX reference.
    assert jnp.allclose(loss, ref, rtol=2e-2, atol=2e-3), (loss, ref)

    print("KERNEL_OK")
</pallas_src>

<mosaic_0001>
module attributes {stable_mosaic.version = 11 : i64} {
  func.func @_sinkhorn_kernel(%arg0: memref<11xf32, #tpu.memory_space<smem>>, %arg1: memref<11xf32, #tpu.memory_space<smem>>, %arg2: memref<8x128xf32, #tpu.memory_space<vmem>>, %arg3: memref<8x128xf32, #tpu.memory_space<vmem>>, %arg4: memref<1x1xf32, #tpu.memory_space<smem>>) attributes {dimension_semantics = [], scalar_prefetch = 0 : i64, scratch_operands = 0 : i64, tpu.core_type = #tpu.core_type<tc>} {
    %c0 = arith.constant 0 : index
    %c0_0 = arith.constant 0 : index
    %0 = vector.load %arg2[%c0, %c0_0] : memref<8x128xf32, #tpu.memory_space<vmem>>, vector<8x128xf32>
    %c0_1 = arith.constant 0 : index
    %c0_2 = arith.constant 0 : index
    %1 = vector.load %arg3[%c0_1, %c0_2] : memref<8x128xf32, #tpu.memory_space<vmem>>, vector<8x128xf32>
    %2 = arith.mulf %0, %0 : vector<8x128xf32>
    %cst = arith.constant dense<0.000000e+00> : vector<8xf32>
    %3 = vector.multi_reduction <add>, %2, %cst [1] : vector<8x128xf32> to vector<8xf32>
    %4 = vector.shape_cast %3 : vector<8xf32> to vector<8x1xf32>
    %5 = math.rsqrt %4 : vector<8x1xf32>
    %6 = vector.broadcast %5 : vector<8x1xf32> to vector<8x128xf32>
    %7 = arith.mulf %0, %6 : vector<8x128xf32>
    %8 = arith.mulf %1, %1 : vector<8x128xf32>
    %cst_3 = arith.constant dense<0.000000e+00> : vector<8xf32>
    %9 = vector.multi_reduction <add>, %8, %cst_3 [1] : vector<8x128xf32> to vector<8xf32>
    %10 = vector.shape_cast %9 : vector<8xf32> to vector<8x1xf32>
    %11 = math.rsqrt %10 : vector<8x1xf32>
    %12 = vector.broadcast %11 : vector<8x1xf32> to vector<8x128xf32>
    %13 = arith.mulf %1, %12 : vector<8x128xf32>
    %cst_4 = arith.constant dense<0.000000e+00> : vector<8x8xf32>
    %14 = tpu.matmul %7, %13, %cst_4 {dimension_numbers = #tpu.dot_dimension_numbers<[1], [1], [0], [0], [0, 0, 1, 0], [], []>} : vector<8x128xf32>, vector<8x128xf32>, vector<8x8xf32> -> vector<8x8xf32>
    %cst_5 = arith.constant 1.000000e+00 : f32
    %15 = vector.broadcast %cst_5 : f32 to vector<8x8xf32>
    %16 = arith.subf %15, %14 : vector<8x8xf32>
    %17 = arith.mulf %16, %16 : vector<8x8xf32>
    %cst_6 = arith.constant dense<0.000000e+00> : vector<8x8xf32>
    %18 = tpu.matmul %7, %7, %cst_6 {dimension_numbers = #tpu.dot_dimension_numbers<[1], [1], [0], [0], [0, 0, 1, 0], [], []>} : vector<8x128xf32>, vector<8x128xf32>, vector<8x8xf32> -> vector<8x8xf32>
    %cst_7 = arith.constant 1.000000e+00 : f32
    %19 = vector.broadcast %cst_7 : f32 to vector<8x8xf32>
    %20 = arith.subf %19, %18 : vector<8x8xf32>
    %21 = arith.mulf %20, %20 : vector<8x8xf32>
    %cst_8 = arith.constant dense<0.000000e+00> : vector<8x8xf32>
    %22 = tpu.matmul %13, %13, %cst_8 {dimension_numbers = #tpu.dot_dimension_numbers<[1], [1], [0], [0], [0, 0, 1, 0], [], []>} : vector<8x128xf32>, vector<8x128xf32>, vector<8x8xf32> -> vector<8x8xf32>
    %cst_9 = arith.constant 1.000000e+00 : f32
    %23 = vector.broadcast %cst_9 : f32 to vector<8x8xf32>
    %24 = arith.subf %23, %22 : vector<8x8xf32>
    %25 = arith.mulf %24, %24 : vector<8x8xf32>
    %26 = tpu.iota {dimensions = array<i32: 0>} : vector<8x1xi32>
    %27 = tpu.iota {dimensions = array<i32: 1>} : vector<1x8xi32>
    %c4_i32 = arith.constant 4 : i32
    %28 = vector.broadcast %c4_i32 : i32 to vector<8x1xi32>
    %29 = arith.cmpi slt, %26, %28 : vector<8x1xi32>
    %cst_10 = arith.constant 2.500000e-01 : f32
    %cst_11 = arith.constant 0.000000e+00 : f32
    %30 = vector.broadcast %cst_10 : f32 to vector<8x1xf32>
    %31 = vector.broadcast %cst_11 : f32 to vector<8x1xf32>
    %32 = arith.select %29, %30, %31 : vector<8x1xi1>, vector<8x1xf32>
    %c4_i32_12 = arith.constant 4 : i32
    %33 = vector.broadcast %c4_i32_12 : i32 to vector<1x8xi32>
    %34 = arith.cmpi slt, %27, %33 : vector<1x8xi32>
    %cst_13 = arith.constant 2.500000e-01 : f32
    %cst_14 = arith.constant 0.000000e+00 : f32
    %35 = vector.broadcast %cst_13 : f32 to vector<1x8xf32>
    %36 = vector.broadcast %cst_14 : f32 to vector<1x8xf32>
    %37 = arith.select %34, %35, %36 : vector<1x8xi1>, vector<1x8xf32>
    %c4_i32_15 = arith.constant 4 : i32
    %38 = vector.broadcast %c4_i32_15 : i32 to vector<8x1xi32>
    %39 = arith.cmpi slt, %26, %38 : vector<8x1xi32>
    %cst_16 = arith.constant -1.38629436 : f32
    %cst_17 = arith.constant -1.000000e+30 : f32
    %40 = vector.broadcast %cst_16 : f32 to vector<8x1xf32>
    %41 = vector.broadcast %cst_17 : f32 to vector<8x1xf32>
    %42 = arith.select %39, %40, %41 : vector<8x1xi1>, vector<8x1xf32>
    %c4_i32_18 = arith.constant 4 : i32
    %43 = vector.broadcast %c4_i32_18 : i32 to vector<1x8xi32>
    %44 = arith.cmpi slt, %27, %43 : vector<1x8xi32>
    %cst_19 = arith.constant -1.38629436 : f32
    %cst_20 = arith.constant -1.000000e+30 : f32
    %45 = vector.broadcast %cst_19 : f32 to vector<1x8xf32>
    %46 = vector.broadcast %cst_20 : f32 to vector<1x8xf32>
    %47 = arith.select %44, %45, %46 : vector<1x8xi1>, vector<1x8xf32>
    %48 = tpu.iota {dimensions = array<i32: 0>} : vector<8x8xi32>
    %49 = tpu.iota {dimensions = array<i32: 1>} : vector<8x8xi32>
    %50 = arith.cmpi eq, %48, %49 : vector<8x8xi32>
    %cst_21 = arith.constant 1.000000e+00 : f32
    %cst_22 = arith.constant 0.000000e+00 : f32
    %51 = vector.broadcast %cst_21 : f32 to vector<8x8xf32>
    %52 = vector.broadcast %cst_22 : f32 to vector<8x8xf32>
    %53 = arith.select %50, %51, %52 : vector<8x8xi1>, vector<8x8xf32>
    %c0_23 = arith.constant 0 : index
    %54 = memref.load %arg0[%c0_23] : memref<11xf32, #tpu.memory_space<smem>>
    %c0_24 = arith.constant 0 : index
    %55 = memref.load %arg1[%c0_24] : memref<11xf32, #tpu.memory_space<smem>>
    %56 = vector.broadcast %55 : f32 to vector<8x8xf32>
    %57 = arith.mulf %17, %56 : vector<8x8xf32>
    %58 = vector.broadcast %55 : f32 to vector<8x8xf32>
    %59 = arith.mulf %21, %58 : vector<8x8xf32>
    %60 = vector.broadcast %55 : f32 to vector<8x8xf32>
    %61 = arith.mulf %25, %60 : vector<8x8xf32>
    %62 = vector.broadcast %47 : vector<1x8xf32> to vector<8x8xf32>
    %63 = arith.subf %62, %57 : vector<8x8xf32>
    %cst_25 = arith.constant dense<0xFF800000> : vector<8xf32>
    %64 = vector.multi_reduction <maximumf>, %63, %cst_25 [1] : vector<8x8xf32> to vector<8xf32>
    %65 = vector.shape_cast %64 : vector<8xf32> to vector<8x1xf32>
    %cst_26 = arith.constant 0.000000e+00 : f32
    %66 = arith.subf %cst_26, %54 : f32
    %67 = vector.broadcast %65 : vector<8x1xf32> to vector<8x8xf32>
    %68 = arith.subf %63, %67 : vector<8x8xf32>
    %69 = math.exp %68 : vector<8x8xf32>
    %cst_27 = arith.constant dense<0.000000e+00> : vector<8xf32>
    %70 = vector.multi_reduction <add>, %69, %cst_27 [1] : vector<8x8xf32> to vector<8xf32>
    %71 = vector.shape_cast %70 : vector<8xf32> to vector<8x1xf32>
    %72 = math.log %71 : vector<8x1xf32>
    %73 = arith.addf %65, %72 : vector<8x1xf32>
    %74 = vector.broadcast %66 : f32 to vector<8x1xf32>
    %75 = arith.mulf %74, %73 : vector<8x1xf32>
    %76 = vector.broadcast %42 : vector<8x1xf32> to vector<8x8xf32>
    %77 = arith.subf %76, %57 : vector<8x8xf32>
    %cst_28 = arith.constant dense<0xFF800000> : vector<8xf32>
    %78 = vector.multi_reduction <maximumf>, %77, %cst_28 [0] : vector<8x8xf32> to vector<8xf32>
    %79 = vector.shape_cast %78 : vector<8xf32> to vector<1x8xf32>
    %cst_29 = arith.constant 0.000000e+00 : f32
    %80 = arith.subf %cst_29, %54 : f32
    %81 = vector.broadcast %79 : vector<1x8xf32> to vector<8x8xf32>
    %82 = arith.subf %77, %81 : vector<8x8xf32>
    %83 = math.exp %82 : vector<8x8xf32>
    %cst_30 = arith.constant dense<0.000000e+00> : vector<8xf32>
    %84 = vector.multi_reduction <add>, %83, %cst_30 [0] : vector<8x8xf32> to vector<8xf32>
    %85 = vector.shape_cast %84 : vector<8xf32> to vector<1x8xf32>
    %86 = math.log %85 : vector<1x8xf32>
    %87 = arith.addf %79, %86 : vector<1x8xf32>
    %88 = vector.broadcast %80 : f32 to vector<1x8xf32>
    %89 = arith.mulf %88, %87 : vector<1x8xf32>
    %90 = vector.broadcast %42 : vector<8x1xf32> to vector<8x8xf32>
    %91 = arith.subf %90, %59 : vector<8x8xf32>
    %cst_31 = arith.constant dense<0xFF800000> : vector<8xf32>
    %92 = vector.multi_reduction <maximumf>, %91, %cst_31 [0] : vector<8x8xf32> to vector<8xf32>
    %93 = vector.shape_cast %92 : vector<8xf32> to vector<1x8xf32>
    %cst_32 = arith.constant 0.000000e+00 : f32
    %94 = arith.subf %cst_32, %54 : f32
    %95 = vector.broadcast %93 : vector<1x8xf32> to vector<8x8xf32>
    %96 = arith.subf %91, %95 : vector<8x8xf32>
    %97 = math.exp %96 : vector<8x8xf32>
    %cst_33 = arith.constant dense<0.000000e+00> : vector<8xf32>
    %98 = vector.multi_reduction <add>, %97, %cst_33 [0] : vector<8x8xf32> to vector<8xf32>
    %99 = vector.shape_cast %98 : vector<8xf32> to vector<1x8xf32>
    %100 = math.log %99 : vector<1x8xf32>
    %101 = arith.addf %93, %100 : vector<1x8xf32>
    %102 = vector.broadcast %94 : f32 to vector<1x8xf32>
    %103 = arith.mulf %102, %101 : vector<1x8xf32>
    %104 = vector.broadcast %42 : vector<8x1xf32> to vector<8x8xf32>
    %105 = arith.subf %104, %61 : vector<8x8xf32>
    %cst_34 = arith.constant dense<0xFF800000> : vector<8xf32>
    %106 = vector.multi_reduction <maximumf>, %105, %cst_34 [0] : vector<8x8xf32> to vector<8xf32>
    %107 = vector.shape_cast %106 : vector<8xf32> to vector<1x8xf32>
    %cst_35 = arith.constant 0.000000e+00 : f32
    %108 = arith.subf %cst_35, %54 : f32
    %109 = vector.broadcast %107 : vector<1x8xf32> to vector<8x8xf32>
    %110 = arith.subf %105, %109 : vector<8x8xf32>
    %111 = math.exp %110 : vector<8x8xf32>
    %cst_36 = arith.constant dense<0.000000e+00> : vector<8xf32>
    %112 = vector.multi_reduction <add>, %111, %cst_36 [0] : vector<8x8xf32> to vector<8xf32>
    %113 = vector.shape_cast %112 : vector<8xf32> to vector<1x8xf32>
    %114 = math.log %113 : vector<1x8xf32>
    %115 = arith.addf %107, %114 : vector<1x8xf32>
    %116 = vector.broadcast %108 : f32 to vector<1x8xf32>
    %117 = arith.mulf %116, %115 : vector<1x8xf32>
    %c0_i32 = arith.constant 0 : i32
    %c11_i32 = arith.constant 11 : i32
    %118 = arith.addi %c0_i32, %c11_i32 : i32
    %c1_i32 = arith.constant 1 : i32
    %119:4 = scf.for %arg5 = %c0_i32 to %118 step %c1_i32 iter_args(%arg6 = %75, %arg7 = %89, %arg8 = %103, %arg9 = %117) -> (vector<8x1xf32>, vector<1x8xf32>, vector<1x8xf32>, vector<1x8xf32>)  : i32 {
      %223 = arith.index_cast %arg5 : i32 to index
      %224 = memref.load %arg0[%223] : memref<11xf32, #tpu.memory_space<smem>>
      %225 = arith.index_cast %arg5 : i32 to index
      %226 = memref.load %arg1[%225] : memref<11xf32, #tpu.memory_space<smem>>
      %227 = vector.broadcast %226 : f32 to vector<8x8xf32>
      %228 = arith.mulf %17, %227 : vector<8x8xf32>
      %229 = vector.broadcast %226 : f32 to vector<8x8xf32>
      %230 = arith.mulf %21, %229 : vector<8x8xf32>
      %231 = vector.broadcast %226 : f32 to vector<8x8xf32>
      %232 = arith.mulf %25, %231 : vector<8x8xf32>
      %233 = vector.broadcast %226 : f32 to vector<1x8xf32>
      %234 = arith.mulf %arg7, %233 : vector<1x8xf32>
      %235 = arith.addf %47, %234 : vector<1x8xf32>
      %236 = vector.broadcast %235 : vector<1x8xf32> to vector<8x8xf32>
      %237 = arith.subf %236, %228 : vector<8x8xf32>
      %cst_58 = arith.constant dense<0xFF800000> : vector<8xf32>
      %238 = vector.multi_reduction <maximumf>, %237, %cst_58 [1] : vector<8x8xf32> to vector<8xf32>
      %239 = vector.shape_cast %238 : vector<8xf32> to vector<8x1xf32>
      %cst_59 = arith.constant 0.000000e+00 : f32
      %240 = arith.subf %cst_59, %224 : f32
      %241 = vector.broadcast %239 : vector<8x1xf32> to vector<8x8xf32>
      %242 = arith.subf %237, %241 : vector<8x8xf32>
      %243 = math.exp %242 : vector<8x8xf32>
      %cst_60 = arith.constant dense<0.000000e+00> : vector<8xf32>
      %244 = vector.multi_reduction <add>, %243, %cst_60 [1] : vector<8x8xf32> to vector<8xf32>
      %245 = vector.shape_cast %244 : vector<8xf32> to vector<8x1xf32>
      %246 = math.log %245 : vector<8x1xf32>
      %247 = arith.addf %239, %246 : vector<8x1xf32>
      %248 = vector.broadcast %240 : f32 to vector<8x1xf32>
      %249 = arith.mulf %248, %247 : vector<8x1xf32>
      %250 = vector.broadcast %226 : f32 to vector<8x1xf32>
      %251 = arith.mulf %arg6, %250 : vector<8x1xf32>
      %252 = arith.addf %42, %251 : vector<8x1xf32>
      %253 = vector.broadcast %252 : vector<8x1xf32> to vector<8x8xf32>
      %254 = arith.subf %253, %228 : vector<8x8xf32>
      %cst_61 = arith.constant dense<0xFF800000> : vector<8xf32>
      %255 = vector.multi_reduction <maximumf>, %254, %cst_61 [0] : vector<8x8xf32> to vector<8xf32>
      %256 = vector.shape_cast %255 : vector<8xf32> to vector<1x8xf32>
      %cst_62 = arith.constant 0.000000e+00 : f32
      %257 = arith.subf %cst_62, %224 : f32
      %258 = vector.broadcast %256 : vector<1x8xf32> to vector<8x8xf32>
      %259 = arith.subf %254, %258 : vector<8x8xf32>
      %260 = math.exp %259 : vector<8x8xf32>
      %cst_63 = arith.constant dense<0.000000e+00> : vector<8xf32>
      %261 = vector.multi_reduction <add>, %260, %cst_63 [0] : vector<8x8xf32> to vector<8xf32>
      %262 = vector.shape_cast %261 : vector<8xf32> to vector<1x8xf32>
      %263 = math.log %262 : vector<1x8xf32>
      %264 = arith.addf %256, %263 : vector<1x8xf32>
      %265 = vector.broadcast %257 : f32 to vector<1x8xf32>
      %266 = arith.mulf %265, %264 : vector<1x8xf32>
      %267 = vector.broadcast %arg8 : vector<1x8xf32> to vector<8x8xf32>
      %268 = arith.mulf %53, %267 : vector<8x8xf32>
      %cst_64 = arith.constant dense<0.000000e+00> : vector<8xf32>
      %269 = vector.multi_reduction <add>, %268, %cst_64 [1] : vector<8x8xf32> to vector<8xf32>
      %270 = vector.shape_cast %269 : vector<8xf32> to vector<8x1xf32>
      %271 = vector.broadcast %226 : f32 to vector<8x1xf32>
      %272 = arith.mulf %270, %271 : vector<8x1xf32>
      %273 = arith.addf %42, %272 : vector<8x1xf32>
      %274 = vector.broadcast %273 : vector<8x1xf32> to vector<8x8xf32>
      %275 = arith.subf %274, %230 : vector<8x8xf32>
      %cst_65 = arith.constant dense<0xFF800000> : vector<8xf32>
      %276 = vector.multi_reduction <maximumf>, %275, %cst_65 [0] : vector<8x8xf32> to vector<8xf32>
      %277 = vector.shape_cast %276 : vector<8xf32> to vector<1x8xf32>
      %cst_66 = arith.constant 0.000000e+00 : f32
      %278 = arith.subf %cst_66, %224 : f32
      %279 = vector.broadcast %277 : vector<1x8xf32> to vector<8x8xf32>
      %280 = arith.subf %275, %279 : vector<8x8xf32>
      %281 = math.exp %280 : vector<8x8xf32>
      %cst_67 = arith.constant dense<0.000000e+00> : vector<8xf32>
      %282 = vector.multi_reduction <add>, %281, %cst_67 [0] : vector<8x8xf32> to vector<8xf32>
      %283 = vector.shape_cast %282 : vector<8xf32> to vector<1x8xf32>
      %284 = math.log %283 : vector<1x8xf32>
      %285 = arith.addf %277, %284 : vector<1x8xf32>
      %286 = vector.broadcast %278 : f32 to vector<1x8xf32>
      %287 = arith.mulf %286, %285 : vector<1x8xf32>
      %288 = vector.broadcast %arg9 : vector<1x8xf32> to vector<8x8xf32>
      %289 = arith.mulf %53, %288 : vector<8x8xf32>
      %cst_68 = arith.constant dense<0.000000e+00> : vector<8xf32>
      %290 = vector.multi_reduction <add>, %289, %cst_68 [1] : vector<8x8xf32> to vector<8xf32>
      %291 = vector.shape_cast %290 : vector<8xf32> to vector<8x1xf32>
      %292 = vector.broadcast %226 : f32 to vector<8x1xf32>
      %293 = arith.mulf %291, %292 : vector<8x1xf32>
      %294 = arith.addf %42, %293 : vector<8x1xf32>
      %295 = vector.broadcast %294 : vector<8x1xf32> to vector<8x8xf32>
      %296 = arith.subf %295, %232 : vector<8x8xf32>
      %cst_69 = arith.constant dense<0xFF800000> : vector<8xf32>
      %297 = vector.multi_reduction <maximumf>, %296, %cst_69 [0] : vector<8x8xf32> to vector<8xf32>
      %298 = vector.shape_cast %297 : vector<8xf32> to vector<1x8xf32>
      %cst_70 = arith.constant 0.000000e+00 : f32
      %299 = arith.subf %cst_70, %224 : f32
      %300 = vector.broadcast %298 : vector<1x8xf32> to vector<8x8xf32>
      %301 = arith.subf %296, %300 : vector<8x8xf32>
      %302 = math.exp %301 : vector<8x8xf32>
      %cst_71 = arith.constant dense<0.000000e+00> : vector<8xf32>
      %303 = vector.multi_reduction <add>, %302, %cst_71 [0] : vector<8x8xf32> to vector<8xf32>
      %304 = vector.shape_cast %303 : vector<8xf32> to vector<1x8xf32>
      %305 = math.log %304 : vector<1x8xf32>
      %306 = arith.addf %298, %305 : vector<1x8xf32>
      %307 = vector.broadcast %299 : f32 to vector<1x8xf32>
      %308 = arith.mulf %307, %306 : vector<1x8xf32>
      %309 = arith.addf %arg6, %249 : vector<8x1xf32>
      %cst_72 = arith.constant 5.000000e-01 : f32
      %310 = vector.broadcast %cst_72 : f32 to vector<8x1xf32>
      %311 = arith.mulf %310, %309 : vector<8x1xf32>
      %312 = arith.addf %arg7, %266 : vector<1x8xf32>
      %cst_73 = arith.constant 5.000000e-01 : f32
      %313 = vector.broadcast %cst_73 : f32 to vector<1x8xf32>
      %314 = arith.mulf %313, %312 : vector<1x8xf32>
      %315 = arith.addf %arg8, %287 : vector<1x8xf32>
      %cst_74 = arith.constant 5.000000e-01 : f32
      %316 = vector.broadcast %cst_74 : f32 to vector<1x8xf32>
      %317 = arith.mulf %316, %315 : vector<1x8xf32>
      %318 = arith.addf %arg9, %308 : vector<1x8xf32>
      %cst_75 = arith.constant 5.000000e-01 : f32
      %319 = vector.broadcast %cst_75 : f32 to vector<1x8xf32>
      %320 = arith.mulf %319, %318 : vector<1x8xf32>
      scf.yield %311, %314, %317, %320 : vector<8x1xf32>, vector<1x8xf32>, vector<1x8xf32>, vector<1x8xf32>
    }
    %c11_i32_37 = arith.constant 11 : i32
    %c10 = arith.constant 10 : index
    %120 = memref.load %arg0[%c10] : memref<11xf32, #tpu.memory_space<smem>>
    %c10_38 = arith.constant 10 : index
    %121 = memref.load %arg1[%c10_38] : memref<11xf32, #tpu.memory_space<smem>>
    %122 = vector.broadcast %121 : f32 to vector<8x8xf32>
    %123 = arith.mulf %17, %122 : vector<8x8xf32>
    %124 = vector.broadcast %121 : f32 to vector<8x8xf32>
    %125 = arith.mulf %21, %124 : vector<8x8xf32>
    %126 = vector.broadcast %121 : f32 to vector<8x8xf32>
    %127 = arith.mulf %25, %126 : vector<8x8xf32>
    %128 = vector.broadcast %121 : f32 to vector<1x8xf32>
    %129 = arith.mulf %119#1, %128 : vector<1x8xf32>
    %130 = arith.addf %47, %129 : vector<1x8xf32>
    %131 = vector.broadcast %130 : vector<1x8xf32> to vector<8x8xf32>
    %132 = arith.subf %131, %123 : vector<8x8xf32>
    %cst_39 = arith.constant dense<0xFF800000> : vector<8xf32>
    %133 = vector.multi_reduction <maximumf>, %132, %cst_39 [1] : vector<8x8xf32> to vector<8xf32>
    %134 = vector.shape_cast %133 : vector<8xf32> to vector<8x1xf32>
    %cst_40 = arith.constant 0.000000e+00 : f32
    %135 = arith.subf %cst_40, %120 : f32
    %136 = vector.broadcast %134 : vector<8x1xf32> to vector<8x8xf32>
    %137 = arith.subf %132, %136 : vector<8x8xf32>
    %138 = math.exp %137 : vector<8x8xf32>
    %cst_41 = arith.constant dense<0.000000e+00> : vector<8xf32>
    %139 = vector.multi_reduction <add>, %138, %cst_41 [1] : vector<8x8xf32> to vector<8xf32>
    %140 = vector.shape_cast %139 : vector<8xf32> to vector<8x1xf32>
    %141 = math.log %140 : vector<8x1xf32>
    %142 = arith.addf %134, %141 : vector<8x1xf32>
    %143 = vector.broadcast %135 : f32 to vector<8x1xf32>
    %144 = arith.mulf %143, %142 : vector<8x1xf32>
    %145 = vector.broadcast %121 : f32 to vector<8x1xf32>
    %146 = arith.mulf %119#0, %145 : vector<8x1xf32>
    %147 = arith.addf %42, %146 : vector<8x1xf32>
    %148 = vector.broadcast %147 : vector<8x1xf32> to vector<8x8xf32>
    %149 = arith.subf %148, %123 : vector<8x8xf32>
    %cst_42 = arith.constant dense<0xFF800000> : vector<8xf32>
    %150 = vector.multi_reduction <maximumf>, %149, %cst_42 [0] : vector<8x8xf32> to vector<8xf32>
    %151 = vector.shape_cast %150 : vector<8xf32> to vector<1x8xf32>
    %cst_43 = arith.constant 0.000000e+00 : f32
    %152 = arith.subf %cst_43, %120 : f32
    %153 = vector.broadcast %151 : vector<1x8xf32> to vector<8x8xf32>
    %154 = arith.subf %149, %153 : vector<8x8xf32>
    %155 = math.exp %154 : vector<8x8xf32>
    %cst_44 = arith.constant dense<0.000000e+00> : vector<8xf32>
    %156 = vector.multi_reduction <add>, %155, %cst_44 [0] : vector<8x8xf32> to vector<8xf32>
    %157 = vector.shape_cast %156 : vector<8xf32> to vector<1x8xf32>
    %158 = math.log %157 : vector<1x8xf32>
    %159 = arith.addf %151, %158 : vector<1x8xf32>
    %160 = vector.broadcast %152 : f32 to vector<1x8xf32>
    %161 = arith.mulf %160, %159 : vector<1x8xf32>
    %162 = vector.broadcast %119#2 : vector<1x8xf32> to vector<8x8xf32>
    %163 = arith.mulf %53, %162 : vector<8x8xf32>
    %cst_45 = arith.constant dense<0.000000e+00> : vector<8xf32>
    %164 = vector.multi_reduction <add>, %163, %cst_45 [1] : vector<8x8xf32> to vector<8xf32>
    %165 = vector.shape_cast %164 : vector<8xf32> to vector<8x1xf32>
    %166 = vector.broadcast %121 : f32 to vector<8x1xf32>
    %167 = arith.mulf %165, %166 : vector<8x1xf32>
    %168 = arith.addf %42, %167 : vector<8x1xf32>
    %169 = vector.broadcast %168 : vector<8x1xf32> to vector<8x8xf32>
    %170 = arith.subf %169, %125 : vector<8x8xf32>
    %cst_46 = arith.constant dense<0xFF800000> : vector<8xf32>
    %171 = vector.multi_reduction <maximumf>, %170, %cst_46 [0] : vector<8x8xf32> to vector<8xf32>
    %172 = vector.shape_cast %171 : vector<8xf32> to vector<1x8xf32>
    %cst_47 = arith.constant 0.000000e+00 : f32
    %173 = arith.subf %cst_47, %120 : f32
    %174 = vector.broadcast %172 : vector<1x8xf32> to vector<8x8xf32>
    %175 = arith.subf %170, %174 : vector<8x8xf32>
    %176 = math.exp %175 : vector<8x8xf32>
    %cst_48 = arith.constant dense<0.000000e+00> : vector<8xf32>
    %177 = vector.multi_reduction <add>, %176, %cst_48 [0] : vector<8x8xf32> to vector<8xf32>
    %178 = vector.shape_cast %177 : vector<8xf32> to vector<1x8xf32>
    %179 = math.log %178 : vector<1x8xf32>
    %180 = arith.addf %172, %179 : vector<1x8xf32>
    %181 = vector.broadcast %173 : f32 to vector<1x8xf32>
    %182 = arith.mulf %181, %180 : vector<1x8xf32>
    %183 = vector.broadcast %119#3 : vector<1x8xf32> to vector<8x8xf32>
    %184 = arith.mulf %53, %183 : vector<8x8xf32>
    %cst_49 = arith.constant dense<0.000000e+00> : vector<8xf32>
    %185 = vector.multi_reduction <add>, %184, %cst_49 [1] : vector<8x8xf32> to vector<8xf32>
    %186 = vector.shape_cast %185 : vector<8xf32> to vector<8x1xf32>
    %187 = vector.broadcast %121 : f32 to vector<8x1xf32>
    %188 = arith.mulf %186, %187 : vector<8x1xf32>
    %189 = arith.addf %42, %188 : vector<8x1xf32>
    %190 = vector.broadcast %189 : vector<8x1xf32> to vector<8x8xf32>
    %191 = arith.subf %190, %127 : vector<8x8xf32>
    %cst_50 = arith.constant dense<0xFF800000> : vector<8xf32>
    %192 = vector.multi_reduction <maximumf>, %191, %cst_50 [0] : vector<8x8xf32> to vector<8xf32>
    %193 = vector.shape_cast %192 : vector<8xf32> to vector<1x8xf32>
    %cst_51 = arith.constant 0.000000e+00 : f32
    %194 = arith.subf %cst_51, %120 : f32
    %195 = vector.broadcast %193 : vector<1x8xf32> to vector<8x8xf32>
    %196 = arith.subf %191, %195 : vector<8x8xf32>
    %197 = math.exp %196 : vector<8x8xf32>
    %cst_52 = arith.constant dense<0.000000e+00> : vector<8xf32>
    %198 = vector.multi_reduction <add>, %197, %cst_52 [0] : vector<8x8xf32> to vector<8xf32>
    %199 = vector.shape_cast %198 : vector<8xf32> to vector<1x8xf32>
    %200 = math.log %199 : vector<1x8xf32>
    %201 = arith.addf %193, %200 : vector<1x8xf32>
    %202 = vector.broadcast %194 : f32 to vector<1x8xf32>
    %203 = arith.mulf %202, %201 : vector<1x8xf32>
    %204 = arith.mulf %32, %144 : vector<8x1xf32>
    %205 = vector.shape_cast %204 : vector<8x1xf32> to vector<1x8x1xf32>
    %cst_53 = arith.constant dense<0.000000e+00> : vector<1xf32>
    %206 = vector.multi_reduction <add>, %205, %cst_53 [1, 2] : vector<1x8x1xf32> to vector<1xf32>
    %207 = vector.shape_cast %206 : vector<1xf32> to vector<1x1x1xf32>
    %208 = vector.extract %207[0, 0, 0] : f32 from vector<1x1x1xf32>
    %209 = arith.mulf %37, %182 : vector<1x8xf32>
    %210 = vector.shape_cast %209 : vector<1x8xf32> to vector<1x1x8xf32>
    %cst_54 = arith.constant dense<0.000000e+00> : vector<1xf32>
    %211 = vector.multi_reduction <add>, %210, %cst_54 [1, 2] : vector<1x1x8xf32> to vector<1xf32>
    %212 = vector.shape_cast %211 : vector<1xf32> to vector<1x1x1xf32>
    %213 = vector.extract %212[0, 0, 0] : f32 from vector<1x1x1xf32>
    %214 = arith.subf %208, %213 : f32
    %215 = arith.subf %161, %203 : vector<1x8xf32>
    %216 = arith.mulf %37, %215 : vector<1x8xf32>
    %217 = vector.shape_cast %216 : vector<1x8xf32> to vector<1x1x8xf32>
    %cst_55 = arith.constant dense<0.000000e+00> : vector<1xf32>
    %218 = vector.multi_reduction <add>, %217, %cst_55 [1, 2] : vector<1x1x8xf32> to vector<1xf32>
    %219 = vector.shape_cast %218 : vector<1xf32> to vector<1x1x1xf32>
    %220 = vector.extract %219[0, 0, 0] : f32 from vector<1x1x1xf32>
    %221 = arith.addf %214, %220 : f32
    %c0_56 = arith.constant 0 : index
    %c0_57 = arith.constant 0 : index
    %222 = memref.load %arg4[%c0_56, %c0_57] : memref<1x1xf32, #tpu.memory_space<smem>>
    memref.store %221, %arg4[%c0_56, %c0_57] : memref<1x1xf32, #tpu.memory_space<smem>>
    return
  }
}

</mosaic_0001>

<llo_original>
// kernel: tpu_custom_call.1
$region0: #{tpu_custom_call.1}
  #allocation0 [shape = 'u32[]', space=smem, size = 0x4, offset = 0x4, fixed_abs, tag = 'smem constant byte address 0x4 - core index']
  #allocation1 [shape = 'u32[72,128]{1,0:T(1,128)}', space=vmem, size = 0x9000, scoped, tag = 'internal scratch']
  %s0 = inlined_call_operand.hbm [shape: f32[11], index: 0, kind: input, shape index: {}]
  %s1 = inlined_call_operand.hbm [shape: f32[11], index: 1, kind: input, shape index: {}]
  %s2 = inlined_call_operand.hbm [shape: f32[8,128], index: 2, kind: input, shape index: {}]
  %s3 = inlined_call_operand.hbm [shape: f32[8,128], index: 3, kind: input, shape index: {}]
  %s4 = inlined_call_operand.hbm [shape: f32[1,1], index: 4, kind: output, shape index: {}]
  %s5 = sld [smem:[#allocation0]]
  $region49: #{tpu_custom_call.1} parent=0
    _
  %s7 = ssub.s32 1, %s5
  %s8 = scalar_select 0, %s7, %s5
  $region1: #{tpu_custom_call.1} parent=0
    #allocation2 [shape = 'u8[512]{0}', space=smem, size = 0x200, scoped, tag = 'input window, operand 0, single buffered']
    #allocation3 [shape = 's32[1]{0}', space=sflag, size = 0x4, scoped, tag = 'scoped memory for tpu_custom_call.1']
    #allocation4 [shape = 's32[1]{0}', space=sflag, size = 0x4, scoped, tag = 'scoped memory for tpu_custom_call.1']
    #allocation5 [shape = 's32[1]{0}', space=sflag, size = 0x4, scoped, tag = 'scoped memory for tpu_custom_call.1']
    #allocation6 [shape = 'u8[512]{0}', space=smem, size = 0x200, scoped, tag = 'input window, operand 1, single buffered']
    #allocation7 [shape = 's32[1]{0}', space=sflag, size = 0x4, scoped, tag = 'scoped memory for tpu_custom_call.1']
    #allocation8 [shape = 'u8[4096]{0}', space=vmem, size = 0x1000, scoped, tag = 'input window, operand 2, single buffered']
    #allocation9 [shape = 'u8[4096]{0}', space=vmem, size = 0x1000, scoped, tag = 'input window, operand 3, single buffered']
    #allocation10 [shape = 's32[1]{0}', space=sflag, size = 0x4, scoped, tag = 'scoped memory for tpu_custom_call.1']
    #allocation11 [shape = 'u8[512]{0}', space=smem, size = 0x200, scoped, tag = 'output window, operand 0, single buffered']
    %9 = vsyncpa [#allocation4], 0
    %10 = vsyncpa [#allocation7], 0
    %11 = vsyncpa [#allocation3], 0
    %12 = vsyncpa [#allocation10], 0
    %13 = vsyncpa [#allocation5], 0
    // Predicated region
    $region2: #{tpu_custom_call.1} parent=1 // pred_check
      _
    $region3: #{tpu_custom_call.1} parent=1 // pred_check_branch
      %15 = sbr.rel (0) target = $region5
    $region4: #{tpu_custom_call.1} parent=1 // pred_region
      %17 = vsyncadd [#allocation4], 0
      %s19 = sshll.u32 %s0, 4
      %s20 = int_to_ptr.hbm [resolvable:$true] %s19
      %22 = dma.hbm_to_smem %s20, 16, [#allocation2], [#allocation4]
    $region5: #{tpu_custom_call.1} parent=1 // pred_fallthru
      _
    // Predicated region
    $region6: #{tpu_custom_call.1} parent=1 // pred_check
      _
    $region7: #{tpu_custom_call.1} parent=1 // pred_check_branch
      %24 = sbr.rel (0) target = $region9
    $region8: #{tpu_custom_call.1} parent=1 // pred_region
      %26 = vsyncadd [#allocation7], 0
      %s28 = sshll.u32 %s1, 4
      %s29 = int_to_ptr.hbm [resolvable:$true] %s28
      %31 = dma.hbm_to_smem %s29, 16, [#allocation6], [#allocation7]
    $region9: #{tpu_custom_call.1} parent=1 // pred_fallthru
      _
    // Predicated region
    $region10: #{tpu_custom_call.1} parent=1 // pred_check
      _
    $region11: #{tpu_custom_call.1} parent=1 // pred_check_branch
      %33 = sbr.rel (0) target = $region13
    $region12: #{tpu_custom_call.1} parent=1 // pred_region
      %35 = vsyncadd [#allocation3], 0
      %s37 = sshll.u32 %s2, 4
      %s38 = int_to_ptr.hbm [resolvable:$true] %s37
      %s39 = sshll.u32 [#allocation8], 4
      %s40 = int_to_ptr.vmem [resolvable:$true] %s39
      %42 = dma.hbm_to_vmem [thread:$0]  %s38, 128, %s40, [#allocation3]
    $region13: #{tpu_custom_call.1} parent=1 // pred_fallthru
      _
    // Predicated region
    $region14: #{tpu_custom_call.1} parent=1 // pred_check
      _
    $region15: #{tpu_custom_call.1} parent=1 // pred_check_branch
      %44 = sbr.rel (0) target = $region17
    $region16: #{tpu_custom_call.1} parent=1 // pred_region
      %46 = vsyncadd [#allocation10], 0
      %s48 = sshll.u32 %s3, 4
      %s49 = int_to_ptr.hbm [resolvable:$true] %s48
      %s50 = sshll.u32 [#allocation9], 4
      %s51 = int_to_ptr.vmem [resolvable:$true] %s50
      %53 = dma.hbm_to_vmem [thread:$0]  %s49, 128, %s51, [#allocation10]
    $region17: #{tpu_custom_call.1} parent=1 // pred_fallthru
      _
    // Predicated region
    $region18: #{tpu_custom_call.1} parent=1 // pred_check
      _
    $region19: #{tpu_custom_call.1} parent=1 // pred_check_branch
      %55 = sbr.rel (0) target = $region21
    $region20: #{tpu_custom_call.1} parent=1 // pred_region
      %57 = dma.done [#allocation4], 16
    $region21: #{tpu_custom_call.1} parent=1 // pred_fallthru
      _
    // Predicated region
    $region22: #{tpu_custom_call.1} parent=1 // pred_check
      _
    $region23: #{tpu_custom_call.1} parent=1 // pred_check_branch
      %59 = sbr.rel (0) target = $region25
    $region24: #{tpu_custom_call.1} parent=1 // pred_region
      %61 = dma.done [#allocation7], 16
    $region25: #{tpu_custom_call.1} parent=1 // pred_fallthru
      _
    // Predicated region
    $region26: #{tpu_custom_call.1} parent=1 // pred_check
      _
    $region27: #{tpu_custom_call.1} parent=1 // pred_check_branch
      %63 = sbr.rel (0) target = $region29
    $region28: #{tpu_custom_call.1} parent=1 // pred_region
      %65 = dma.done [#allocation3], 128
    $region29: #{tpu_custom_call.1} parent=1 // pred_fallthru
      _
    // Predicated region
    $region30: #{tpu_custom_call.1} parent=1 // pred_check
      _
    $region31: #{tpu_custom_call.1} parent=1 // pred_check_branch
      %67 = sbr.rel (0) target = $region33
    $region32: #{tpu_custom_call.1} parent=1 // pred_region
      %69 = dma.done [#allocation10], 128
    $region33: #{tpu_custom_call.1} parent=1 // pred_fallthru
      _
    %70 = sfence
    %v71 = vld [vmem:[#allocation8] sm:$0xff]
    %v72 = vld [vmem:[#allocation9] sm:$0xff]
    %v73 = vmul.f32 %v71, %v71
    %74 = vadd.xlane.f32.xlu0 %v73
    %v75 = vpop.xlane.xlu0 %74
    %v76 = vrsqrt.pop %v75
    %v77 = vmul.f32 %v76, %v75
    %v78 = vmul.f32 %v77, %v76
    %v79 = vmul.f32 0.5, %v78
    %v80 = vsub.f32 1.5, %v79
    %v81 = vmul.f32 %v76, %v80
    %vm82 = vweird.f32 %v75
    %vm83 = vweird.f32 %v76
    %vm84 = vmor %vm82, %vm83
    %v85 = vsel %vm84, %v76, %v81
    %v86 = vmul.f32 %v71, %v85
    %v87 = vmul.f32 %v72, %v72
    %88 = vadd.xlane.f32.xlu0 %v87
    %v89 = vpop.xlane.xlu0 %88
    %v90 = vrsqrt.pop %v89
    %v91 = vmul.f32 %v90, %v89
    %v92 = vmul.f32 %v91, %v90
    %v93 = vmul.f32 0.5, %v92
    %v94 = vsub.f32 1.5, %v93
    %v95 = vmul.f32 %v90, %v94
    %vm96 = vweird.f32 %v89
    %vm97 = vweird.f32 %v90
    %vm98 = vmor %vm96, %vm97
    %v99 = vsel %vm98, %v90, %v95
    %v100 = vmul.f32 %v72, %v99
    %101 = vmatpush.xpose.msra.mxu0 0.0
    %102 = vmatpush.xpose.msra.mxu0 0.0
    %103 = vmatpush.xpose.msra.mxu0 0.0
    %104 = vmatpush.xpose.msra.mxu0 0.0
    %105 = vmatpush.xpose.msra.mxu0 0.0
    %106 = vmatpush.xpose.msra.mxu0 0.0
    %107 = vmatpush.xpose.msra.mxu0 0.0
    %108 = vmatpush.xpose.msra.mxu0 0.0
    %109 = vmatpush.xpose.msra.mxu0 0.0
    %110 = vmatpush.xpose.msra.mxu0 0.0
    %111 = vmatpush.xpose.msra.mxu0 0.0
    %112 = vmatpush.xpose.msra.mxu0 0.0
    %113 = vmatpush.xpose.msra.mxu0 0.0
    %114 = vmatpush.xpose.msra.mxu0 0.0
    %115 = vmatpush.xpose.msra.mxu0 0.0
    %116 = vmatpush.xpose.msra.mxu0 %v100
    %117 = vmatmul.f32.gmra.mxu0 %v86
    %v118 = vpop.f32.mrf.mxu0
    %v119 = vadd.f32 0.0, %v118
    %120 = vdwg.mxu0
    %v121 = vsub.f32 1.0, %v119
    %v122 = vmul.f32 %v121, %v121
    %123 = vmatpush.xpose.msra.mxu0 0.0
    %124 = vmatpush.xpose.msra.mxu0 0.0
    %125 = vmatpush.xpose.msra.mxu0 0.0
    %126 = vmatpush.xpose.msra.mxu0 0.0
    %127 = vmatpush.xpose.msra.mxu0 0.0
    %128 = vmatpush.xpose.msra.mxu0 0.0
    %129 = vmatpush.xpose.msra.mxu0 0.0
    %130 = vmatpush.xpose.msra.mxu0 0.0
    %131 = vmatpush.xpose.msra.mxu0 0.0
    %132 = vmatpush.xpose.msra.mxu0 0.0
    %133 = vmatpush.xpose.msra.mxu0 0.0
    %134 = vmatpush.xpose.msra.mxu0 0.0
    %135 = vmatpush.xpose.msra.mxu0 0.0
    %136 = vmatpush.xpose.msra.mxu0 0.0
    %137 = vmatpush.xpose.msra.mxu0 0.0
    %138 = vmatpush.xpose.msra.mxu0 %v86
    %139 = vmatmul.f32.gmra.mxu0 %v86
    %v140 = vpop.f32.mrf.mxu0
    %v141 = vadd.f32 0.0, %v140
    %142 = vdwg.mxu0
    %v143 = vsub.f32 1.0, %v141
    %v144 = vmul.f32 %v143, %v143
    %145 = vmatpush.xpose.msra.mxu0 0.0
    %146 = vmatpush.xpose.msra.mxu0 0.0
    %147 = vmatpush.xpose.msra.mxu0 0.0
    %148 = vmatpush.xpose.msra.mxu0 0.0
    %149 = vmatpush.xpose.msra.mxu0 0.0
    %150 = vmatpush.xpose.msra.mxu0 0.0
    %151 = vmatpush.xpose.msra.mxu0 0.0
    %152 = vmatpush.xpose.msra.mxu0 0.0
    %153 = vmatpush.xpose.msra.mxu0 0.0
    %154 = vmatpush.xpose.msra.mxu0 0.0
    %155 = vmatpush.xpose.msra.mxu0 0.0
    %156 = vmatpush.xpose.msra.mxu0 0.0
    %157 = vmatpush.xpose.msra.mxu0 0.0
    %158 = vmatpush.xpose.msra.mxu0 0.0
    %159 = vmatpush.xpose.msra.mxu0 0.0
    %160 = vmatpush.xpose.msra.mxu0 %v100
    %161 = vmatmul.f32.gmra.mxu0 %v100
    %v162 = vpop.f32.mrf.mxu0
    %v163 = vadd.f32 0.0, %v162
    %164 = vdwg.mxu0
    %v165 = vsub.f32 1.0, %v163
    %v166 = vmul.f32 %v165, %v165
    %v167 = vlaneseq
    %v168 = vshrl.u32 %v167, 7
    %v169 = vlaneseq
    %v170 = vand.u32 %v169, 127
    %vm171 = vcmp.lt.s32.totalorder %v168, 4
    %v172 = vsel %vm171, 0.25, 0.0
    %vm173 = vcmp.lt.s32.totalorder %v170, 4
    %v174 = vsel %vm173, 0.25, 0.0
    %v175 = vsel %vm171, -1.3862944, -1e+30
    %v176 = vsel %vm173, -1.3862944, -1e+30
    %vm177 = vcmp.eq.s32.totalorder %v168, %v170
    %v178 = vsel %vm177, 1.0, 0.0
    %s179 = sld [smem:[#allocation2]]
    %s180 = sld [smem:[#allocation6]]
    %v181 = vstv %s180
    %v182 = vmul.f32 %v122, %v181
    %v183 = vmul.f32 %v144, %v181
    %v184 = vmul.f32 %v166, %v181
    %v185 = vsub.f32 %v176, %v182
    %vm186 = vcmask 64512
    %v187 = vsel %vm186, %v185, -inf
    %188 = vmax.xlane.f32.xlu0 %v187
    %v189 = vpop.xlane.xlu0 %188
    %s190 = ssub.f32 0.0, %s179
    %v191 = vsub.f32 %v185, %v189
    %v192 = vmul.f32 %v191, 1.442695
    %v193 = vpow.pop %v192
    %v194 = vsel %vm186, %v193, 0.0
    %195 = vadd.xlane.f32.xlu0 %v194
    %v196 = vpop.xlane.xlu0 %195
    %v197 = vlog2.pop %v196
    %v198 = vmul.f32 %v197, 0.6931472
    %v199 = vadd.f32 %v189, %v198
    %v200 = vstv %s190
    %v201 = vmul.f32 %v200, %v199
    %v202 = vsub.f32 %v175, %v182
    %v203 = vsel %vm186, %v202, -inf
    %v204 = vrot.slane %v203, 4
    %v205 = vmax.f32 %v203, %v204
    %v206 = vrot.slane %v205, 2
    %v207 = vmax.f32 %v205, %v206
    %v208 = vrot.slane %v207, 1
    %v209 = vmax.f32 %v207, %v208
    %v210 = vsub.f32 %v202, %v209
    %v211 = vmul.f32 %v210, 1.442695
    %v212 = vpow.pop %v211
    %v213 = vsel %vm186, %v212, 0.0
    %v214 = vrot.slane %v213, 4
    %v215 = vadd.f32 %v213, %v214
    %v216 = vrot.slane %v215, 2
    %v217 = vadd.f32 %v215, %v216
    %v218 = vrot.slane %v217, 1
    %v219 = vadd.f32 %v217, %v218
    %v220 = vlog2.pop %v219
    %v221 = vmul.f32 %v220, 0.6931472
    %v222 = vadd.f32 %v209, %v221
    %v223 = vmul.f32 %v200, %v222
    %v224 = vsub.f32 %v175, %v183
    %v225 = vsel %vm186, %v224, -inf
    %v226 = vrot.slane %v225, 4
    %v227 = vmax.f32 %v225, %v226
    %v228 = vrot.slane %v227, 2
    %v229 = vmax.f32 %v227, %v228
    %v230 = vrot.slane %v229, 1
    %v231 = vmax.f32 %v229, %v230
    %v232 = vsub.f32 %v224, %v231
    %v233 = vmul.f32 %v232, 1.442695
    %v234 = vpow.pop %v233
    %v235 = vsel %vm186, %v234, 0.0
    %v236 = vrot.slane %v235, 4
    %v237 = vadd.f32 %v235, %v236
    %v238 = vrot.slane %v237, 2
    %v239 = vadd.f32 %v237, %v238
    %v240 = vrot.slane %v239, 1
    %v241 = vadd.f32 %v239, %v240
    %v242 = vlog2.pop %v241
    %v243 = vmul.f32 %v242, 0.6931472
    %v244 = vadd.f32 %v231, %v243
    %v245 = vmul.f32 %v200, %v244
    %v246 = vsub.f32 %v175, %v184
    %v247 = vsel %vm186, %v246, -inf
    %v248 = vrot.slane %v247, 4
    %v249 = vmax.f32 %v247, %v248
    %v250 = vrot.slane %v249, 2
    %v251 = vmax.f32 %v249, %v250
    %v252 = vrot.slane %v251, 1
    %v253 = vmax.f32 %v251, %v252
    %v254 = vsub.f32 %v246, %v253
    %v255 = vmul.f32 %v254, 1.442695
    %v256 = vpow.pop %v255
    %v257 = vsel %vm186, %v256, 0.0
    %v258 = vrot.slane %v257, 4
    %v259 = vadd.f32 %v257, %v258
    %v260 = vrot.slane %v259, 2
    %v261 = vadd.f32 %v259, %v260
    %v262 = vrot.slane %v261, 1
    %v263 = vadd.f32 %v261, %v262
    %v264 = vlog2.pop %v263
    %v265 = vmul.f32 %v264, 0.6931472
    %v266 = vadd.f32 %v253, %v265
    %v267 = vmul.f32 %v200, %v266
    loop: start=0, step=1, limit=11
    $region34: #{tpu_custom_call.1} parent=1 // loop_pre_header
      _
    $region35: #{tpu_custom_call.1} parent=1 // loop_header
      %s269 = sphi 0, %s273
      %p270 = scmp.ge.s32.totalorder %s269, 11
      %v274 = vphi %v201, %v383
      %v275 = vphi %v223, %v385
      %v276 = vphi %v245, %v387
      %v277 = vphi %v267, %v389
    $region36: #{tpu_custom_call.1} parent=1 // loop_header_branch
      %272 = sbr.rel (%p270) target = $region40
    $region37: #{tpu_custom_call.1} parent=1 // loop_body
      %s278 = sld [smem:[#allocation2 + %s269]]
      %s279 = sld [smem:[#allocation6 + %s269]]
      %v280 = vstv %s279
      %v281 = vmul.f32 %v122, %v280
      %v282 = vmul.f32 %v144, %v280
      %v283 = vmul.f32 %v166, %v280
      %v284 = vmul.f32 %v275, %v280
      %v285 = vadd.f32 %v176, %v284
      %v286 = vsub.f32 %v285, %v281
      %v287 = vsel %vm186, %v286, -inf
      %288 = vmax.xlane.f32.xlu0 %v287
      %v289 = vpop.xlane.xlu0 %288
      %s290 = ssub.f32 0.0, %s278
      %v291 = vsub.f32 %v286, %v289
      %v292 = vmul.f32 %v291, 1.442695
      %v293 = vpow.pop %v292
      %v294 = vsel %vm186, %v293, 0.0
      %295 = vadd.xlane.f32.xlu0 %v294
      %v296 = vpop.xlane.xlu0 %295
      %v297 = vlog2.pop %v296
      %v298 = vmul.f32 %v297, 0.6931472
      %v299 = vadd.f32 %v289, %v298
      %v300 = vstv %s290
      %v301 = vmul.f32 %v300, %v299
      %v302 = vmul.f32 %v274, %v280
      %v303 = vadd.f32 %v175, %v302
      %v304 = vsub.f32 %v303, %v281
      %v305 = vsel %vm186, %v304, -inf
      %v306 = vrot.slane %v305, 4
      %v307 = vmax.f32 %v305, %v306
      %v308 = vrot.slane %v307, 2
      %v309 = vmax.f32 %v307, %v308
      %v310 = vrot.slane %v309, 1
      %v311 = vmax.f32 %v309, %v310
      %v312 = vsub.f32 %v304, %v311
      %v313 = vmul.f32 %v312, 1.442695
      %v314 = vpow.pop %v313
      %v315 = vsel %vm186, %v314, 0.0
      %v316 = vrot.slane %v315, 4
      %v317 = vadd.f32 %v315, %v316
      %v318 = vrot.slane %v317, 2
      %v319 = vadd.f32 %v317, %v318
      %v320 = vrot.slane %v319, 1
      %v321 = vadd.f32 %v319, %v320
      %v322 = vlog2.pop %v321
      %v323 = vmul.f32 %v322, 0.6931472
      %v324 = vadd.f32 %v311, %v323
      %v325 = vmul.f32 %v300, %v324
      %v326 = vmul.f32 %v178, %v276
      %v327 = vsel %vm186, %v326, 0.0
      %328 = vadd.xlane.f32.xlu0 %v327
      %v329 = vpop.xlane.xlu0 %328
      %v330 = vmul.f32 %v329, %v280
      %v331 = vadd.f32 %v175, %v330
      %v332 = vsub.f32 %v331, %v282
      %v333 = vsel %vm186, %v332, -inf
      %v334 = vrot.slane %v333, 4
      %v335 = vmax.f32 %v333, %v334
      %v336 = vrot.slane %v335, 2
      %v337 = vmax.f32 %v335, %v336
      %v338 = vrot.slane %v337, 1
      %v339 = vmax.f32 %v337, %v338
      %v340 = vsub.f32 %v332, %v339
      %v341 = vmul.f32 %v340, 1.442695
      %v342 = vpow.pop %v341
      %v343 = vsel %vm186, %v342, 0.0
      %v344 = vrot.slane %v343, 4
      %v345 = vadd.f32 %v343, %v344
      %v346 = vrot.slane %v345, 2
      %v347 = vadd.f32 %v345, %v346
      %v348 = vrot.slane %v347, 1
      %v349 = vadd.f32 %v347, %v348
      %v350 = vlog2.pop %v349
      %v351 = vmul.f32 %v350, 0.6931472
      %v352 = vadd.f32 %v339, %v351
      %v353 = vmul.f32 %v300, %v352
      %v354 = vmul.f32 %v178, %v277
      %v355 = vsel %vm186, %v354, 0.0
      %356 = vadd.xlane.f32.xlu0 %v355
      %v357 = vpop.xlane.xlu0 %356
      %v358 = vmul.f32 %v357, %v280
      %v359 = vadd.f32 %v175, %v358
      %v360 = vsub.f32 %v359, %v283
      %v361 = vsel %vm186, %v360, -inf
      %v362 = vrot.slane %v361, 4
      %v363 = vmax.f32 %v361, %v362
      %v364 = vrot.slane %v363, 2
      %v365 = vmax.f32 %v363, %v364
      %v366 = vrot.slane %v365, 1
      %v367 = vmax.f32 %v365, %v366
      %v368 = vsub.f32 %v360, %v367
      %v369 = vmul.f32 %v368, 1.442695
      %v370 = vpow.pop %v369
      %v371 = vsel %vm186, %v370, 0.0
      %v372 = vrot.slane %v371, 4
      %v373 = vadd.f32 %v371, %v372
      %v374 = vrot.slane %v373, 2
      %v375 = vadd.f32 %v373, %v374
      %v376 = vrot.slane %v375, 1
      %v377 = vadd.f32 %v375, %v376
      %v378 = vlog2.pop %v377
      %v379 = vmul.f32 %v378, 0.6931472
      %v380 = vadd.f32 %v367, %v379
      %v381 = vmul.f32 %v300, %v380
      %v382 = vadd.f32 %v274, %v301
      %v383 = vmul.f32 %v382, 0.5
      %v384 = vadd.f32 %v275, %v325
      %v385 = vmul.f32 %v384, 0.5
      %v386 = vadd.f32 %v276, %v353
      %v387 = vmul.f32 %v386, 0.5
      %v388 = vadd.f32 %v277, %v381
      %v389 = vmul.f32 %v388, 0.5
    $region38: #{tpu_custom_call.1} parent=1 // loop_footer
      %s273 = sadd.s32 1, %s269
    $region39: #{tpu_custom_call.1} parent=1 // loop_footer_branch
      %268 = sbr.rel target = $region35
    $region40: #{tpu_custom_call.1} parent=1 // loop_exit
      _
    %s390 = sld [smem:[#allocation2 + $0xa]]
    %s391 = sld [smem:[#allocation6 + $0xa]]
    %v392 = vstv %s391
    %v393 = vmul.f32 %v122, %v392
    %v394 = vmul.f32 %v144, %v392
    %v395 = vmul.f32 %v166, %v392
    %v396 = vmul.f32 %v275, %v392
    %v397 = vadd.f32 %v176, %v396
    %v398 = vsub.f32 %v397, %v393
    %v399 = vsel %vm186, %v398, -inf
    %400 = vmax.xlane.f32.xlu0 %v399
    %v401 = vpop.xlane.xlu0 %400
    %s402 = ssub.f32 0.0, %s390
    %v403 = vsub.f32 %v398, %v401
    %v404 = vmul.f32 %v403, 1.442695
    %v405 = vpow.pop %v404
    %v406 = vsel %vm186, %v405, 0.0
    %407 = vadd.xlane.f32.xlu0 %v406
    %v408 = vpop.xlane.xlu0 %407
    %v409 = vlog2.pop %v408
    %v410 = vmul.f32 %v409, 0.6931472
    %v411 = vadd.f32 %v401, %v410
    %v412 = vstv %s402
    %v413 = vmul.f32 %v412, %v411
    %v414 = vmul.f32 %v274, %v392
    %v415 = vadd.f32 %v175, %v414
    %v416 = vsub.f32 %v415, %v393
    %v417 = vsel %vm186, %v416, -inf
    %v418 = vrot.slane %v417, 4
    %v419 = vmax.f32 %v417, %v418
    %v420 = vrot.slane %v419, 2
    %v421 = vmax.f32 %v419, %v420
    %v422 = vrot.slane %v421, 1
    %v423 = vmax.f32 %v421, %v422
    %v424 = vsub.f32 %v416, %v423
    %v425 = vmul.f32 %v424, 1.442695
    %v426 = vpow.pop %v425
    %v427 = vsel %vm186, %v426, 0.0
    %v428 = vrot.slane %v427, 4
    %v429 = vadd.f32 %v427, %v428
    %v430 = vrot.slane %v429, 2
    %v431 = vadd.f32 %v429, %v430
    %v432 = vrot.slane %v431, 1
    %v433 = vadd.f32 %v431, %v432
    %v434 = vlog2.pop %v433
    %v435 = vmul.f32 %v434, 0.6931472
    %v436 = vadd.f32 %v423, %v435
    %v437 = vmul.f32 %v412, %v436
    %v438 = vmul.f32 %v178, %v276
    %v439 = vsel %vm186, %v438, 0.0
    %440 = vadd.xlane.f32.xlu0 %v439
    %v441 = vpop.xlane.xlu0 %440
    %v442 = vmul.f32 %v441, %v392
    %v443 = vadd.f32 %v175, %v442
    %v444 = vsub.f32 %v443, %v394
    %v445 = vsel %vm186, %v444, -inf
    %v446 = vrot.slane %v445, 4
    %v447 = vmax.f32 %v445, %v446
    %v448 = vrot.slane %v447, 2
    %v449 = vmax.f32 %v447, %v448
    %v450 = vrot.slane %v449, 1
    %v451 = vmax.f32 %v449, %v450
    %v452 = vsub.f32 %v444, %v451
    %v453 = vmul.f32 %v452, 1.442695
    %v454 = vpow.pop %v453
    %v455 = vsel %vm186, %v454, 0.0
    %v456 = vrot.slane %v455, 4
    %v457 = vadd.f32 %v455, %v456
    %v458 = vrot.slane %v457, 2
    %v459 = vadd.f32 %v457, %v458
    %v460 = vrot.slane %v459, 1
    %v461 = vadd.f32 %v459, %v460
    %v462 = vlog2.pop %v461
    %v463 = vmul.f32 %v462, 0.6931472
    %v464 = vadd.f32 %v451, %v463
    %v465 = vmul.f32 %v412, %v464
    %v466 = vmul.f32 %v178, %v277
    %v467 = vsel %vm186, %v466, 0.0
    %468 = vadd.xlane.f32.xlu0 %v467
    %v469 = vpop.xlane.xlu0 %468
    %v470 = vmul.f32 %v469, %v392
    %v471 = vadd.f32 %v175, %v470
    %v472 = vsub.f32 %v471, %v395
    %v473 = vsel %vm186, %v472, -inf
    %v474 = vrot.slane %v473, 4
    %v475 = vmax.f32 %v473, %v474
    %v476 = vrot.slane %v475, 2
    %v477 = vmax.f32 %v475, %v476
    %v478 = vrot.slane %v477, 1
    %v479 = vmax.f32 %v477, %v478
    %v480 = vsub.f32 %v472, %v479
    %v481 = vmul.f32 %v480, 1.442695
    %v482 = vpow.pop %v481
    %v483 = vsel %vm186, %v482, 0.0
    %v484 = vrot.slane %v483, 4
    %v485 = vadd.f32 %v483, %v484
    %v486 = vrot.slane %v485, 2
    %v487 = vadd.f32 %v485, %v486
    %v488 = vrot.slane %v487, 1
    %v489 = vadd.f32 %v487, %v488
    %v490 = vlog2.pop %v489
    %v491 = vmul.f32 %v490, 0.6931472
    %v492 = vadd.f32 %v479, %v491
    %v493 = vmul.f32 %v412, %v492
    %v494 = vmul.f32 %v172, %v413
    %vm495 = vcmask 7168
    %v496 = vsel %vm495, %v494, 0.0
    %497 = vadd.xlane.f32.xlu0 %v496
    %v498 = vpop.xlane.xlu0 %497
    %v499 = vrot.slane %v498, 4
    %v500 = vadd.f32 %v498, %v499
    %v501 = vrot.slane %v500, 2
    %v502 = vadd.f32 %v500, %v501
    %v503 = vrot.slane %v502, 1
    %v504 = vadd.f32 %v502, %v503
    %s505 = vtos %v504
    %v506 = vmul.f32 %v174, %v465
    %vm507 = vcmask 57344
    %v508 = vsel %vm507, %v506, 0.0
    %509 = vadd.xlane.f32.xlu0 %v508
    %v510 = vpop.xlane.xlu0 %509
    %v511 = vrot.slane %v510, 4
    %v512 = vadd.f32 %v510, %v511
    %v513 = vrot.slane %v512, 2
    %v514 = vadd.f32 %v512, %v513
    %v515 = vrot.slane %v514, 1
    %v516 = vadd.f32 %v514, %v515
    %s517 = vtos %v516
    %s518 = ssub.f32 %s505, %s517
    %v519 = vsub.f32 %v437, %v493
    %v520 = vmul.f32 %v174, %v519
    %v521 = vsel %vm507, %v520, 0.0
    %522 = vadd.xlane.f32.xlu0 %v521
    %v523 = vpop.xlane.xlu0 %522
    %v524 = vrot.slane %v523, 4
    %v525 = vadd.f32 %v523, %v524
    %v526 = vrot.slane %v525, 2
    %v527 = vadd.f32 %v525, %v526
    %v528 = vrot.slane %v527, 1
    %v529 = vadd.f32 %v527, %v528
    %s530 = vtos %v529
    %s531 = sadd.f32 %s518, %s530
    %s532 = scalar_lea.smem [#allocation11], 0
    %533 = sst [smem:[%s532]] %s531
    // Predicated region
    $region41: #{tpu_custom_call.1} parent=1 // pred_check
      _
    $region42: #{tpu_custom_call.1} parent=1 // pred_check_branch
      %535 = sbr.rel (0) target = $region44
    $region43: #{tpu_custom_call.1} parent=1 // pred_region
      %537 = vsyncadd [#allocation5], 0
      %s539 = sshll.u32 %s4, 4
      %s540 = int_to_ptr.hbm [resolvable:$true] %s539
      %542 = dma.smem_to_hbm [#allocation11], 16, %s540, [#allocation5]
    $region44: #{tpu_custom_call.1} parent=1 // pred_fallthru
      _
    // Predicated region
    $region45: #{tpu_custom_call.1} parent=1 // pred_check
      _
    $region46: #{tpu_custom_call.1} parent=1 // pred_check_branch
      %544 = sbr.rel (0) target = $region48
    $region47: #{tpu_custom_call.1} parent=1 // pred_region
      %546 = dma.done [#allocation5], 16
    $region48: #{tpu_custom_call.1} parent=1 // pred_fallthru
      _
    %547 = sfence
    %548 = vsyncpa [#allocation3], 1
    %549 = vsyncpa [#allocation10], 1
    %550 = vsyncpa [#allocation4], 1
    %551 = vsyncpa [#allocation7], 1
    %552 = vsyncpa [#allocation5], 1

</llo_original>
